<compile_context>
chip_gen: v7x
topology: tpu7x:2x2x1
jax: 0.10.0
libtpu: 0.0.40
codegen_flags: <defaults>
</compile_context>

<pallas_src>
import math

import jax
import jax.numpy as jnp
from jax.experimental import pallas as pl
from jax.experimental.pallas import tpu as pltpu


def _gp_forward_kernel(const_ref, var_ref, mean_out_ref, var_out_ref):
    """One lane-dense (D, TILE_N) tile per grid step.

    const_ref    : VMEM (D, 1)  ConstantMean constant per task (resident)
    var_ref      : VMEM (D, 1)  outputscale_j + noise_j per task (resident)
    mean_out_ref : VMEM (D, TILE_N) predictive mean tile
    var_out_ref  : VMEM (D, TILE_N) predictive variance tile
    """
    mean_out_ref[...] = jnp.broadcast_to(
        const_ref[...], mean_out_ref.shape).astype(mean_out_ref.dtype)
    var_out_ref[...] = jnp.broadcast_to(
        var_ref[...], var_out_ref.shape).astype(var_out_ref.dtype)


def dagma_gp_dce_forward(x, constants, lengthscales, outputscales, noises, *,
                         tile_n=4096, out_dtype=jnp.float32,
                         lane_dense_output=False, use_pallas=None):
    """Pallas implementation of DagmaGP_DCE.forward (+ the per-task variances
    the PyTorch loop materializes alongside the means).

    x            : (N, D) float32 training inputs (only N is needed here)
    constants    : (D,)   per-task ConstantMean constant
    lengthscales : (D, D) ARD lengthscales (unused: train-mode prior
                          mean/variance on the training inputs are
                          lengthscale-independent)
    outputscales : (D,)   ScaleKernel outputscale per task
    noises       : (D,)   GaussianLikelihood noise per task

    Returns (means, variances).  Default layout is (N, D), matching
    torch.stack(predictive_means, dim=1).  With lane_dense_output=True the
    kernel's native (D, N) layout is returned and the extra HBM transpose pass
    is skipped (fuse the transpose into the consumer instead).
    """
    x = jnp.asarray(x, jnp.float32)
    n, d = x.shape
    _ = lengthscales  # not needed for the train-mode prior mean/variance

    const_col = jnp.asarray(constants, jnp.float32).reshape(d, 1)
    # Matern-2.5 diagonal at r = 0 is exactly 1 -> variance = outputscale + noise.
    var_col = (jnp.asarray(outputscales, jnp.float32)
               + jnp.asarray(noises, jnp.float32)).reshape(d, 1)

    if use_pallas is None:
        # At tiny sizes pallas_call launch overhead dominates a pure broadcast;
        # let XLA handle it (and ideally fuse it into the consumer).
        use_pallas = (n * d) >= (1 << 16)

    if not use_pallas:
        means_t = jnp.broadcast_to(const_col, (d, n)).astype(out_dtype)
        vars_t = jnp.broadcast_to(var_col, (d, n)).astype(out_dtype)
    else:
        # Lane-dense tile over N: multiple of 128, capped at the padded N and
        # sized far below v7x's 64 MiB VMEM (2 outputs x 2 pipeline buffers).
        n_padded = ((n + 127) // 128) * 128
        tile_n_eff = max(128, min(int(tile_n), n_padded))
        tile_n_eff = (tile_n_eff // 128) * 128
        grid_n = pl.cdiv(n, tile_n_eff)

        out_itemsize = jnp.dtype(out_dtype).itemsize
        # 2 outputs x 2 pipeline buffers x (d, tile_n) tile, plus headroom.
        vmem_bytes = 4 * d * tile_n_eff * out_itemsize + (2 << 20)

        means_t, vars_t = pl.pallas_call(
            _gp_forward_kernel,
            out_shape=(jax.ShapeDtypeStruct((d, n), out_dtype),
                       jax.ShapeDtypeStruct((d, n), out_dtype)),
            grid=(grid_n,),
            in_specs=[pl.BlockSpec((d, 1), lambda i: (0, 0)),
                      pl.BlockSpec((d, 1), lambda i: (0, 0))],
            out_specs=(pl.BlockSpec((d, tile_n_eff), lambda i: (0, i)),
                       pl.BlockSpec((d, tile_n_eff), lambda i: (0, i))),
            compiler_params=pltpu.CompilerParams(
                dimension_semantics=("parallel",),
                vmem_limit_bytes=int(vmem_bytes)),
        )(const_col, var_col)

    if lane_dense_output:
        return means_t, vars_t
    # (D, N) lane-dense kernel output -> (N, D) to match the PyTorch stacking.
    # (Extra HBM pass; pass lane_dense_output=True to avoid it when possible.)
    return means_t.T, vars_t.T


def _reference(x, constants, lengthscales, outputscales, noises):
    """Pure-JAX reference mirroring gpytorch's train-mode prior-through-
    likelihood path (full ARD Matern-2.5 covariance, diagonal + noise,
    constant mean)."""
    n, d = x.shape
    means, varis = [], []
    for j in range(d):
        keep = [i for i in range(d) if i != j]
        xs = x[:, keep] / lengthscales[j, keep]
        diff = xs[:, None, :] - xs[None, :, :]
        d2 = jnp.maximum(jnp.sum(diff * diff, axis=-1), 0.0)
        r = jnp.sqrt(d2)
        k = (1.0 + math.sqrt(5.0) * r + (5.0 / 3.0) * d2) * jnp.exp(-math.sqrt(5.0) * r)
        cov = outputscales[j] * k
        varis.append(jnp.diag(cov) + noises[j])
        means.append(jnp.full((n,), constants[j], dtype=jnp.float32))
    return jnp.stack(means, axis=1), jnp.stack(varis, axis=1)


# TODO(synk): gpytorch's hyperparameter training loop, the autograd-based
# get_graph() Jacobian, h_func (slogdet) and get_l1_reg have no Pallas
# forward-pass equivalent here; only forward() is implemented.

if __name__ == "__main__":
    key = jax.random.PRNGKey(0)
    k_x, k_c, k_l, k_o, k_n = jax.random.split(key, 5)

    N, D = 512, 8          # N training samples, D tasks (= num features)
    x = jax.random.normal(k_x, (N, D), dtype=jnp.float32)

    # Deterministic synthetic GP hyper-parameters (softplus(0) ~= 0.6931 is the
    # gpytorch default raw-parameter transform value; perturbed so the output
    # is non-trivial).
    constants = 0.5 * jax.random.normal(k_c, (D,), dtype=jnp.float32)
    lengthscales = 0.6931 + 0.3 * jax.random.uniform(k_l, (D, D), dtype=jnp.float32)
    outputscales = 0.6931 + 0.2 * jax.random.uniform(k_o, (D,), dtype=jnp.float32)
    noises = 0.6932 + 0.1 * jax.random.uniform(k_n, (D,), dtype=jnp.float32)

    # Force the Pallas path for the demo (at this small size the auto
    # heuristic would pick the plain-XLA broadcast instead).
    means, variances = dagma_gp_dce_forward(
        x, constants, lengthscales, outputscales, noises, use_pallas=True)
    jax.block_until_ready((means, variances))

    ref_means, ref_vars = _reference(x, constants, lengthscales, outputscales, noises)
    assert means.shape == (N, D) and variances.shape == (N, D)
    assert jnp.allclose(means, ref_means, atol=1e-6, rtol=1e-6)
    assert jnp.allclose(variances, ref_vars, atol=1e-6, rtol=1e-6)

    # Also exercise the transpose-free lane-dense layout path.
    means_dn, vars_dn = dagma_gp_dce_forward(
        x, constants, lengthscales, outputscales, noises,
        use_pallas=True, lane_dense_output=True)
    jax.block_until_ready((means_dn, vars_dn))
    assert means_dn.shape == (D, N) and vars_dn.shape == (D, N)
    assert jnp.allclose(means_dn.T, ref_means, atol=1e-6, rtol=1e-6)
    assert jnp.allclose(vars_dn.T, ref_vars, atol=1e-6, rtol=1e-6)

    print("KERNEL_OK")
</pallas_src>

<mosaic_0001>
module attributes {stable_mosaic.version = 11 : i64} {
  func.func @_gp_forward_kernel(%arg0: i32, %arg1: memref<8x1xf32, #tpu.memory_space<vmem>>, %arg2: memref<8x1xf32, #tpu.memory_space<vmem>>, %arg3: memref<8x512xf32, #tpu.memory_space<vmem>>, %arg4: memref<8x512xf32, #tpu.memory_space<vmem>>) attributes {dimension_semantics = [#tpu.dimension_semantics<parallel>], iteration_bounds = array<i64: 1>, scalar_prefetch = 0 : i64, scratch_operands = 0 : i64, tpu.core_type = #tpu.core_type<tc>, window_params = [{pipeline_mode = #tpu.pipeline_mode<synchronous>, transform_indices = @transform_0, window_bounds = array<i64: 8, 1>}, {pipeline_mode = #tpu.pipeline_mode<synchronous>, transform_indices = @transform_1, window_bounds = array<i64: 8, 1>}, {transform_indices = @transform_2, window_bounds = array<i64: 8, 512>}, {transform_indices = @transform_3, window_bounds = array<i64: 8, 512>}]} {
    %c0 = arith.constant 0 : index
    %c0_0 = arith.constant 0 : index
    %0 = vector.load %arg1[%c0, %c0_0] : memref<8x1xf32, #tpu.memory_space<vmem>>, vector<8x1xf32>
    %1 = vector.shape_cast %0 : vector<8x1xf32> to vector<8x1xf32>
    %2 = vector.broadcast %1 : vector<8x1xf32> to vector<8x512xf32>
    %c0_1 = arith.constant 0 : index
    %c0_2 = arith.constant 0 : index
    %3 = vector.load %arg3[%c0_1, %c0_2] : memref<8x512xf32, #tpu.memory_space<vmem>>, vector<8x512xf32>
    tpu.vector_store %arg3[%c0_1, %c0_2], %2 {strides = array<i32>} : memref<8x512xf32, #tpu.memory_space<vmem>>, vector<8x512xf32>,
    %c0_3 = arith.constant 0 : index
    %c0_4 = arith.constant 0 : index
    %4 = vector.load %arg2[%c0_3, %c0_4] : memref<8x1xf32, #tpu.memory_space<vmem>>, vector<8x1xf32>
    %5 = vector.shape_cast %4 : vector<8x1xf32> to vector<8x1xf32>
    %6 = vector.broadcast %5 : vector<8x1xf32> to vector<8x512xf32>
    %c0_5 = arith.constant 0 : index
    %c0_6 = arith.constant 0 : index
    %7 = vector.load %arg4[%c0_5, %c0_6] : memref<8x512xf32, #tpu.memory_space<vmem>>, vector<8x512xf32>
    tpu.vector_store %arg4[%c0_5, %c0_6], %6 {strides = array<i32>} : memref<8x512xf32, #tpu.memory_space<vmem>>, vector<8x512xf32>,
    return
  }
  func.func @transform_0(%arg0: i32) -> (i32, i32) {
    %c0_i32 = arith.constant 0 : i32
    %c0_i32_0 = arith.constant 0 : i32
    %c0_i32_1 = arith.constant 0 : i32
    return %c0_i32, %c0_i32_0 : i32, i32
  }
  func.func @transform_1(%arg0: i32) -> (i32, i32) {
    %c0_i32 = arith.constant 0 : i32
    %c0_i32_0 = arith.constant 0 : i32
    %c0_i32_1 = arith.constant 0 : i32
    return %c0_i32, %c0_i32_0 : i32, i32
  }
  func.func @transform_2(%arg0: i32) -> (i32, i32) {
    %c0_i32 = arith.constant 0 : i32
    %c0_i32_0 = arith.constant 0 : i32
    return %c0_i32, %arg0 : i32, i32
  }
  func.func @transform_3(%arg0: i32) -> (i32, i32) {
    %c0_i32 = arith.constant 0 : i32
    %c0_i32_0 = arith.constant 0 : i32
    return %c0_i32, %arg0 : i32, i32
  }
}

</mosaic_0001>

<llo_original>
// kernel: tpu_custom_call.1
$region0: #{tpu_custom_call.1}
  #allocation0 [shape = 'u32[]', space=smem, size = 0x4, offset = 0x4, fixed_abs, tag = 'smem constant byte address 0x4 - core index']
  #allocation1 [shape = 'u32[144,128]{1,0:T(1,128)}', space=vmem, size = 0x12000, scoped, tag = 'internal scratch']
  %s0 = inlined_call_operand.vmem [shape: f32[8,1], index: 0, kind: input, shape index: {}]
  %s1 = inlined_call_operand.vmem [shape: f32[8,1], index: 1, kind: input, shape index: {}]
  %s2 = inlined_call_operand.hbm [shape: f32[8,512], index: 2, kind: output, shape index: {0}]
  %s3 = inlined_call_operand.hbm [shape: f32[8,512], index: 3, kind: output, shape index: {1}]
  %4 = xla_tuple %s2, %s3
  %s5 = sld [smem:[#allocation0]]
  $region26: #{tpu_custom_call.1} parent=0
    _
  %s7 = ssub.s32 1, %s5
  %s8 = scalar_select 0, %s7, %s5
  $region1: #{tpu_custom_call.1} parent=0
    #allocation2 [shape = 'u8[16384]{0}', space=vmem, size = 0x4000, scoped, tag = 'output window, operand 0, single buffered']
    #allocation3 [shape = 's32[1]{0}', space=sflag, size = 0x4, scoped, tag = 'scoped memory for tpu_custom_call.1']
    #allocation4 [shape = 'u8[16384]{0}', space=vmem, size = 0x4000, scoped, tag = 'output window, operand 1, single buffered']
    #allocation5 [shape = 's32[1]{0}', space=sflag, size = 0x4, scoped, tag = 'scoped memory for tpu_custom_call.1']
    %9 = vsyncpa [#allocation3], 0
    %10 = vsyncpa [#allocation5], 0
    // Predicated region
    $region2: #{tpu_custom_call.1} parent=1 // pred_check
      _
    $region3: #{tpu_custom_call.1} parent=1 // pred_check_branch
      %12 = sbr.rel (0) target = $region5
    $region4: #{tpu_custom_call.1} parent=1 // pred_region
      _
    $region5: #{tpu_custom_call.1} parent=1 // pred_fallthru
      _
    // Predicated region
    $region6: #{tpu_custom_call.1} parent=1 // pred_check
      _
    $region7: #{tpu_custom_call.1} parent=1 // pred_check_branch
      %14 = sbr.rel (0) target = $region9
    $region8: #{tpu_custom_call.1} parent=1 // pred_region
      _
    $region9: #{tpu_custom_call.1} parent=1 // pred_fallthru
      _
    %v15 = vld [vmem:[%s0] sm:$0xff]
    %17 = vset.pattern.permute.xlu0 0
    %18 = vperm.xlu0 %17, %v15
    %v19 = vpop.permute.xlu0 %18
    %21 = vst [vmem:[#allocation2] sm:$0xff] %v19
    %22 = vst [vmem:[#allocation2 + $0x8] sm:$0xff] %v19
    %23 = vst [vmem:[#allocation2 + $0x10] sm:$0xff] %v19
    %24 = vst [vmem:[#allocation2 + $0x18] sm:$0xff] %v19
    %v25 = vld [vmem:[%s1] sm:$0xff]
    %27 = vset.pattern.permute.xlu0 0
    %28 = vperm.xlu0 %27, %v25
    %v29 = vpop.permute.xlu0 %28
    %31 = vst [vmem:[#allocation4] sm:$0xff] %v29
    %32 = vst [vmem:[#allocation4 + $0x8] sm:$0xff] %v29
    %33 = vst [vmem:[#allocation4 + $0x10] sm:$0xff] %v29
    %34 = vst [vmem:[#allocation4 + $0x18] sm:$0xff] %v29
    // Predicated region
    $region10: #{tpu_custom_call.1} parent=1 // pred_check
      _
    $region11: #{tpu_custom_call.1} parent=1 // pred_check_branch
      %36 = sbr.rel (0) target = $region13
    $region12: #{tpu_custom_call.1} parent=1 // pred_region
      %s38 = ssub.s32 512, 512
      %39 = vsyncadd [#allocation3], %s38
      %s41 = sshll.u32 [#allocation2], 4
      %s42 = int_to_ptr.vmem [resolvable:$true] %s41
      %44 = dma.vmem_to_hbm [thread:$0]  %s42, 512, %s2, [#allocation3]
    $region13: #{tpu_custom_call.1} parent=1 // pred_fallthru
      _
    // Predicated region
    $region14: #{tpu_custom_call.1} parent=1 // pred_check
      _
    $region15: #{tpu_custom_call.1} parent=1 // pred_check_branch
      %46 = sbr.rel (0) target = $region17
    $region16: #{tpu_custom_call.1} parent=1 // pred_region
      %s48 = ssub.s32 512, 512
      %49 = vsyncadd [#allocation5], %s48
      %s51 = sshll.u32 [#allocation4], 4
      %s52 = int_to_ptr.vmem [resolvable:$true] %s51
      %54 = dma.vmem_to_hbm [thread:$0]  %s52, 512, %s3, [#allocation5]
    $region17: #{tpu_custom_call.1} parent=1 // pred_fallthru
      _
    // Predicated region
    $region18: #{tpu_custom_call.1} parent=1 // pred_check
      _
    $region19: #{tpu_custom_call.1} parent=1 // pred_check_branch
      %56 = sbr.rel (0) target = $region21
    $region20: #{tpu_custom_call.1} parent=1 // pred_region
      %57 = dma.done [#allocation3], 512
    $region21: #{tpu_custom_call.1} parent=1 // pred_fallthru
      _
    // Predicated region
    $region22: #{tpu_custom_call.1} parent=1 // pred_check
      _
    $region23: #{tpu_custom_call.1} parent=1 // pred_check_branch
      %59 = sbr.rel (0) target = $region25
    $region24: #{tpu_custom_call.1} parent=1 // pred_region
      %60 = dma.done [#allocation5], 512
    $region25: #{tpu_custom_call.1} parent=1 // pred_fallthru
      _
    %61 = vsyncpa [#allocation3], 1
    %62 = vsyncpa [#allocation5], 1

</llo_original>
